<compile_context>
chip_gen: v7x
topology: tpu7x:2x2x1
jax: 0.10.0
libtpu: 0.0.40
codegen_flags: <defaults>
</compile_context>

<pallas_src>
import functools

import jax
import jax.numpy as jnp
import numpy as np
from jax import lax
from jax.experimental import pallas as pl
from jax.experimental.pallas import tpu as pltpu

_SQRT_HALF = 0.7071067811865476


# ----------------------------------------------------------------------------
# In-kernel math
# ----------------------------------------------------------------------------
def _erf(z):
    """Abramowitz & Stegun 7.1.26 rational erf approximation (|err| <= 1.5e-7).

    Only mul/add/where (VPU) plus exp and an approx reciprocal (EUP slot), so
    it does not rely on an erf primitive lowering inside Mosaic.
    """
    a1, a2, a3, a4, a5 = (0.254829592, -0.284496736, 1.421413741,
                          -1.453152027, 1.061405429)
    p = 0.3275911
    sign = jnp.where(z >= 0.0, 1.0, -1.0)
    za = jnp.abs(z)
    # EUP reciprocal instead of a VALU divide chain.
    t = pl.reciprocal(1.0 + p * za, approx=True)
    poly = ((((a5 * t + a4) * t + a3) * t + a2) * t + a1) * t
    return sign * (1.0 - poly * jnp.exp(-za * za))


def _gelu_exact(x):
    # PyTorch nn.GELU() default is the exact (erf) form, not the tanh approx.
    return 0.5 * x * (1.0 + _erf(x * _SQRT_HALF))


def _mlp_kernel(x_ref, w1_ref, b1_ref, w2_ref, b2_ref, o_ref):
    # x_ref : (bm, K)            activation row-block (streams through HBM)
    # w1_ref: (H, K), b1_ref: (1, H)   fc1 in torch layout, VMEM-resident
    # w2_ref: (O, H), b2_ref: (1, O)   fc2 in torch layout, VMEM-resident
    # o_ref : (bm, O)            lane-dense output row-block
    nt = (((1,), (1,)), ((), ()))        # contract on dim 1 of both (x @ W.T)
    h = lax.dot_general(x_ref[...], w1_ref[...], nt,
                        preferred_element_type=jnp.float32)
    h = _gelu_exact(h + b1_ref[...])
    # Cast the hidden activation back to the input dtype so bf16 inputs keep
    # fc2 on the fast MXU path (accumulation stays f32).
    y = lax.dot_general(h.astype(x_ref.dtype), w2_ref[...], nt,
                        preferred_element_type=jnp.float32)
    # TODO(synk): training-mode dropout (p > 0) would need pltpu.prng_seed /
    # prng_random_bits; module default p = 0.0 is the identity, so it is elided.
    o_ref[...] = (y + b2_ref[...]).astype(o_ref.dtype)


# ----------------------------------------------------------------------------
# Host-side sizing helpers
# ----------------------------------------------------------------------------
def _round_up(v, m):
    return (v + m - 1) // m * m


def _sublane_multiple(dtype):
    # 8 for 4-byte, 16 for 2-byte, 32 for 1-byte elements.
    return max(8, 32 // jnp.dtype(dtype).itemsize)


@functools.lru_cache(maxsize=None)
def _hw_config():
    """Returns (vmem_budget_bytes, vmem_limit_bytes, two_tensorcores)."""
    vmem_cap = None
    try:
        vmem_cap = int(pltpu.get_tpu_info().vmem_capacity_bytes)
    except Exception:
        vmem_cap = None
    kind = ""
    try:
        kind = jax.devices()[0].device_kind.lower()
    except Exception:
        pass
    two_tc = "v7" in kind or "7x" in kind        # v7x: 2 TensorCores / chip
    if vmem_cap is None:
        vmem_cap = (64 << 20) if two_tc else (128 << 20)
    if vmem_cap <= (64 << 20):
        # v7x-class: 64 MiB physical VMEM per TensorCore.
        return 40 << 20, 48 << 20, two_tc
    # v5e / v6e: 128 MiB physical VMEM.
    return 64 << 20, 96 << 20, two_tc


def _choose_block_m(m_rows, k, h, o, x_dtype, w_dtype, budget, two_tc):
    """Largest row-block whose real working set stays inside the VMEM budget."""
    x_isz = jnp.dtype(x_dtype).itemsize
    w_isz = jnp.dtype(w_dtype).itemsize
    sub = _sublane_multiple(x_dtype)
    m_pad = _round_up(m_rows, sub)

    # Weights + biases: single-buffered (pl.Buffered(1)) and VMEM-resident.
    weight_bytes = (k * h + h * o + h + o) * w_isz
    # Per-row working set: double-buffered x / out blocks (input dtype),
    # f32 hidden activation plus ~3 f32 GELU temporaries, f32 fc2 pre-cast.
    per_row = (2 * (k + o) * x_isz
               + 4 * h * 4
               + o * 4)

    avail = max(budget - weight_bytes, per_row * sub)
    bm = int(avail // per_row)
    bm = max(sub, min(bm, 4096, m_pad))

    # Keep the MXU M dimension full: multiples of 128 when affordable,
    # otherwise the dtype sublane multiple.
    if bm >= 128:
        bm -= bm % 128
    else:
        bm -= bm % sub

    # Only v7x (2 TensorCores) benefits from forcing >= 2 parallel grid steps;
    # v5e / v6e are single-TC, so take the largest block that fits.
    if two_tc and m_pad >= 2 * sub and bm > m_pad // 2:
        half = m_pad // 2
        bm = max(sub, half - half % sub)

    # Prefer a bm that exactly divides the sublane-rounded row count so the
    # wrapper can skip jnp.pad / output-slice entirely.
    if m_pad % bm != 0:
        cand = bm
        lo = max(sub, bm // 2)
        while cand >= lo:
            if m_pad % cand == 0:
                bm = cand
                break
            cand -= sub

    return bm, m_pad


# ----------------------------------------------------------------------------
# Public wrapper
# ----------------------------------------------------------------------------
@jax.jit
def mlp_forward(x, w1, b1, w2, b2):
    """ViT Mlp forward with torch nn.Linear parameter layout.

    x : (..., in_features)
    w1: (hidden, in_features),  b1: (hidden,)
    w2: (out_features, hidden), b2: (out_features,)
    """
    in_features = x.shape[-1]
    hidden = w1.shape[0]
    out_features = w2.shape[0]
    lead = x.shape[:-1]

    x2 = x.reshape(-1, in_features)
    m = x2.shape[0]

    budget, vmem_limit, two_tc = _hw_config()
    bm, m_pad = _choose_block_m(m, in_features, hidden, out_features,
                                x.dtype, w1.dtype, budget, two_tc)

    grid_m = pl.cdiv(m_pad, bm)
    m_full = grid_m * bm
    if m_full != m:
        # Ragged tail only (common path picks bm dividing the row count).
        x2 = jnp.pad(x2, ((0, m_full - m), (0, 0)))

    b1r = b1.reshape(1, hidden)
    b2r = b2.reshape(1, out_features)

    # Constant index_map + single buffer: fetched once, resident all grid steps.
    resident = dict(pipeline_mode=pl.Buffered(1))

    # TODO(synk): for configs whose full weights exceed the v7x VMEM budget,
    # add a second "arbitrary" grid axis tiling the hidden dim with an f32
    # accumulator scratch (pl.when init / finalize).
    out = pl.pallas_call(
        _mlp_kernel,
        out_shape=jax.ShapeDtypeStruct((m_full, out_features), x.dtype),
        grid_spec=pltpu.PrefetchScalarGridSpec(
            num_scalar_prefetch=0,
            grid=(grid_m,),
            in_specs=[
                pl.BlockSpec((bm, in_features), lambda i: (i, 0)),
                pl.BlockSpec((hidden, in_features), lambda i: (0, 0), **resident),
                pl.BlockSpec((1, hidden), lambda i: (0, 0), **resident),
                pl.BlockSpec((out_features, hidden), lambda i: (0, 0), **resident),
                pl.BlockSpec((1, out_features), lambda i: (0, 0), **resident),
            ],
            out_specs=pl.BlockSpec((bm, out_features), lambda i: (i, 0)),
        ),
        compiler_params=pltpu.CompilerParams(
            dimension_semantics=("parallel",),
            vmem_limit_bytes=vmem_limit,
        ),
    )(x2, w1, b1r, w2, b2r)

    if m_full != m:
        out = out[:m]
    return out.reshape(lead + (out_features,))


def _ref_mlp(x, w1, b1, w2, b2):
    """Plain-JAX reference mirroring torch: x @ W1.T + b1 -> GELU -> @ W2.T + b2."""
    hp = jax.lax.Precision.HIGHEST
    h = jnp.dot(x, w1.T, precision=hp) + b1
    h = jax.nn.gelu(h, approximate=False)
    return jnp.dot(h, w2.T, precision=hp) + b2


if __name__ == "__main__":
    batch, seq = 2, 8
    in_features, hidden_features, out_features = 128, 256, 128

    key = jax.random.PRNGKey(0)
    kx, kw1, kb1, kw2, kb2 = jax.random.split(key, 5)

    x = jax.random.normal(kx, (batch, seq, in_features), dtype=jnp.float32)

    # PyTorch nn.Linear default init: U(-1/sqrt(fan_in), 1/sqrt(fan_in)).
    bound1 = 1.0 / np.sqrt(in_features)
    w1 = jax.random.uniform(kw1, (hidden_features, in_features),
                            jnp.float32, -bound1, bound1)
    b1 = jax.random.uniform(kb1, (hidden_features,), jnp.float32,
                            -bound1, bound1)
    bound2 = 1.0 / np.sqrt(hidden_features)
    w2 = jax.random.uniform(kw2, (out_features, hidden_features),
                            jnp.float32, -bound2, bound2)
    b2 = jax.random.uniform(kb2, (out_features,), jnp.float32,
                            -bound2, bound2)

    out = mlp_forward(x, w1, b1, w2, b2)
    out = jax.block_until_ready(out)

    ref = _ref_mlp(x, w1, b1, w2, b2)
    # Tolerance covers MXU matmuls at default precision plus the 1.5e-7 erf
    # approximation and the approximate EUP reciprocal; reference runs at
    # HIGHEST precision.
    np.testing.assert_allclose(np.asarray(out), np.asarray(ref),
                               rtol=2e-2, atol=2e-2)

    print("KERNEL_OK")
</pallas_src>

<mosaic_0001>
module attributes {stable_mosaic.version = 11 : i64} {
  func.func @_mlp_kernel(%arg0: i32, %arg1: memref<16x128xf32, #tpu.memory_space<vmem>>, %arg2: memref<256x128xf32, #tpu.memory_space<vmem>>, %arg3: memref<1x256xf32, #tpu.memory_space<vmem>>, %arg4: memref<128x256xf32, #tpu.memory_space<vmem>>, %arg5: memref<1x128xf32, #tpu.memory_space<vmem>>, %arg6: memref<16x128xf32, #tpu.memory_space<vmem>>) attributes {dimension_semantics = [#tpu.dimension_semantics<parallel>], iteration_bounds = array<i64: 1>, scalar_prefetch = 0 : i64, scratch_operands = 0 : i64, tpu.core_type = #tpu.core_type<tc>, window_params = [{transform_indices = @transform_0, window_bounds = array<i64: 16, 128>}, {pipeline_mode = #tpu.pipeline_mode<synchronous>, transform_indices = @transform_1, window_bounds = array<i64: 256, 128>}, {pipeline_mode = #tpu.pipeline_mode<synchronous>, transform_indices = @transform_2, window_bounds = array<i64: 1, 256>}, {pipeline_mode = #tpu.pipeline_mode<synchronous>, transform_indices = @transform_3, window_bounds = array<i64: 128, 256>}, {pipeline_mode = #tpu.pipeline_mode<synchronous>, transform_indices = @transform_4, window_bounds = array<i64: 1, 128>}, {transform_indices = @transform_5, window_bounds = array<i64: 16, 128>}]} {
    %c0 = arith.constant 0 : index
    %c0_0 = arith.constant 0 : index
    %0 = vector.load %arg1[%c0, %c0_0] : memref<16x128xf32, #tpu.memory_space<vmem>>, vector<16x128xf32>
    %c0_1 = arith.constant 0 : index
    %c0_2 = arith.constant 0 : index
    %1 = vector.load %arg2[%c0_1, %c0_2] : memref<256x128xf32, #tpu.memory_space<vmem>>, vector<256x128xf32>
    %cst = arith.constant dense<0.000000e+00> : vector<16x256xf32>
    %2 = tpu.matmul %0, %1, %cst {dimension_numbers = #tpu.dot_dimension_numbers<[1], [1], [0], [0], [0, 0, 1, 0], [], []>} : vector<16x128xf32>, vector<256x128xf32>, vector<16x256xf32> -> vector<16x256xf32>
    %c0_3 = arith.constant 0 : index
    %c0_4 = arith.constant 0 : index
    %3 = vector.load %arg3[%c0_3, %c0_4] : memref<1x256xf32, #tpu.memory_space<vmem>>, vector<1x256xf32>
    %4 = vector.broadcast %3 : vector<1x256xf32> to vector<16x256xf32>
    %5 = arith.addf %2, %4 : vector<16x256xf32>
    %cst_5 = arith.constant 5.000000e-01 : f32
    %6 = vector.broadcast %cst_5 : f32 to vector<16x256xf32>
    %7 = arith.mulf %6, %5 : vector<16x256xf32>
    %cst_6 = arith.constant 0.707106769 : f32
    %8 = vector.broadcast %cst_6 : f32 to vector<16x256xf32>
    %9 = arith.mulf %5, %8 : vector<16x256xf32>
    %cst_7 = arith.constant 0.000000e+00 : f32
    %10 = vector.broadcast %cst_7 : f32 to vector<16x256xf32>
    %11 = arith.cmpf oge, %9, %10 : vector<16x256xf32>
    %cst_8 = arith.constant 1.000000e+00 : f32
    %cst_9 = arith.constant -1.000000e+00 : f32
    %12 = vector.broadcast %cst_8 : f32 to vector<16x256xf32>
    %13 = vector.broadcast %cst_9 : f32 to vector<16x256xf32>
    %14 = arith.select %11, %12, %13 : vector<16x256xi1>, vector<16x256xf32>
    %15 = math.absf %9 : vector<16x256xf32>
    %cst_10 = arith.constant 0.327591091 : f32
    %16 = vector.broadcast %cst_10 : f32 to vector<16x256xf32>
    %17 = arith.mulf %16, %15 : vector<16x256xf32>
    %cst_11 = arith.constant 1.000000e+00 : f32
    %18 = vector.broadcast %cst_11 : f32 to vector<16x256xf32>
    %19 = arith.addf %18, %17 : vector<16x256xf32>
    %20 = tpu.reciprocal %19 {approx = true} : vector<16x256xf32> -> vector<16x256xf32>
    %cst_12 = arith.constant 1.06140542 : f32
    %21 = vector.broadcast %cst_12 : f32 to vector<16x256xf32>
    %22 = arith.mulf %21, %20 : vector<16x256xf32>
    %cst_13 = arith.constant -1.45315206 : f32
    %23 = vector.broadcast %cst_13 : f32 to vector<16x256xf32>
    %24 = arith.addf %22, %23 : vector<16x256xf32>
    %25 = arith.mulf %24, %20 : vector<16x256xf32>
    %cst_14 = arith.constant 1.42141378 : f32
    %26 = vector.broadcast %cst_14 : f32 to vector<16x256xf32>
    %27 = arith.addf %25, %26 : vector<16x256xf32>
    %28 = arith.mulf %27, %20 : vector<16x256xf32>
    %cst_15 = arith.constant -0.284496725 : f32
    %29 = vector.broadcast %cst_15 : f32 to vector<16x256xf32>
    %30 = arith.addf %28, %29 : vector<16x256xf32>
    %31 = arith.mulf %30, %20 : vector<16x256xf32>
    %cst_16 = arith.constant 0.254829586 : f32
    %32 = vector.broadcast %cst_16 : f32 to vector<16x256xf32>
    %33 = arith.addf %31, %32 : vector<16x256xf32>
    %34 = arith.mulf %33, %20 : vector<16x256xf32>
    %cst_17 = arith.constant 0.000000e+00 : f32
    %35 = vector.broadcast %cst_17 : f32 to vector<16x256xf32>
    %36 = arith.subf %35, %15 : vector<16x256xf32>
    %37 = arith.mulf %36, %15 : vector<16x256xf32>
    %38 = math.exp %37 : vector<16x256xf32>
    %39 = arith.mulf %34, %38 : vector<16x256xf32>
    %cst_18 = arith.constant 1.000000e+00 : f32
    %40 = vector.broadcast %cst_18 : f32 to vector<16x256xf32>
    %41 = arith.subf %40, %39 : vector<16x256xf32>
    %42 = arith.mulf %14, %41 : vector<16x256xf32>
    %cst_19 = arith.constant 1.000000e+00 : f32
    %43 = vector.broadcast %cst_19 : f32 to vector<16x256xf32>
    %44 = arith.addf %43, %42 : vector<16x256xf32>
    %45 = arith.mulf %7, %44 : vector<16x256xf32>
    %c0_20 = arith.constant 0 : index
    %c0_21 = arith.constant 0 : index
    %46 = vector.load %arg4[%c0_20, %c0_21] : memref<128x256xf32, #tpu.memory_space<vmem>>, vector<128x256xf32>
    %cst_22 = arith.constant dense<0.000000e+00> : vector<16x128xf32>
    %47 = tpu.matmul %45, %46, %cst_22 {dimension_numbers = #tpu.dot_dimension_numbers<[1], [1], [0], [0], [0, 0, 1, 0], [], []>} : vector<16x256xf32>, vector<128x256xf32>, vector<16x128xf32> -> vector<16x128xf32>
    %c0_23 = arith.constant 0 : index
    %c0_24 = arith.constant 0 : index
    %48 = vector.load %arg5[%c0_23, %c0_24] : memref<1x128xf32, #tpu.memory_space<vmem>>, vector<1x128xf32>
    %49 = vector.broadcast %48 : vector<1x128xf32> to vector<16x128xf32>
    %50 = arith.addf %47, %49 : vector<16x128xf32>
    %c0_25 = arith.constant 0 : index
    %c0_26 = arith.constant 0 : index
    %51 = vector.load %arg6[%c0_25, %c0_26] : memref<16x128xf32, #tpu.memory_space<vmem>>, vector<16x128xf32>
    tpu.vector_store %arg6[%c0_25, %c0_26], %50 {strides = array<i32>} : memref<16x128xf32, #tpu.memory_space<vmem>>, vector<16x128xf32>,
    return
  }
  func.func @transform_0(%arg0: i32) -> (i32, i32) {
    %c0_i32 = arith.constant 0 : i32
    %c0_i32_0 = arith.constant 0 : i32
    return %arg0, %c0_i32 : i32, i32
  }
  func.func @transform_1(%arg0: i32) -> (i32, i32) {
    %c0_i32 = arith.constant 0 : i32
    %c0_i32_0 = arith.constant 0 : i32
    %c0_i32_1 = arith.constant 0 : i32
    return %c0_i32, %c0_i32_0 : i32, i32
  }
  func.func @transform_2(%arg0: i32) -> (i32, i32) {
    %c0_i32 = arith.constant 0 : i32
    %c0_i32_0 = arith.constant 0 : i32
    %c0_i32_1 = arith.constant 0 : i32
    return %c0_i32, %c0_i32_0 : i32, i32
  }
  func.func @transform_3(%arg0: i32) -> (i32, i32) {
    %c0_i32 = arith.constant 0 : i32
    %c0_i32_0 = arith.constant 0 : i32
    %c0_i32_1 = arith.constant 0 : i32
    return %c0_i32, %c0_i32_0 : i32, i32
  }
  func.func @transform_4(%arg0: i32) -> (i32, i32) {
    %c0_i32 = arith.constant 0 : i32
    %c0_i32_0 = arith.constant 0 : i32
    %c0_i32_1 = arith.constant 0 : i32
    return %c0_i32, %c0_i32_0 : i32, i32
  }
  func.func @transform_5(%arg0: i32) -> (i32, i32) {
    %c0_i32 = arith.constant 0 : i32
    %c0_i32_0 = arith.constant 0 : i32
    return %arg0, %c0_i32 : i32, i32
  }
}

</mosaic_0001>

<llo_original>
// kernel: mlp_forward.1
$region0: #{mlp_forward.1}
  #allocation0 [shape = 'u32[]', space=smem, size = 0x4, offset = 0x4, fixed_abs, tag = 'smem constant byte address 0x4 - core index']
  #allocation1 [shape = 'u32[144,128]{1,0:T(1,128)}', space=vmem, size = 0x12000, scoped, tag = 'internal scratch']
  %s0 = inlined_call_operand.hbm [shape: f32[16,128], index: 0, kind: input, shape index: {}]
  %s1 = inlined_call_operand.hbm [shape: f32[256,128], index: 1, kind: input, shape index: {}]
  %s2 = inlined_call_operand.hbm [shape: f32[1,256], index: 2, kind: input, shape index: {}]
  %s3 = inlined_call_operand.hbm [shape: f32[128,256], index: 3, kind: input, shape index: {}]
  %s4 = inlined_call_operand.hbm [shape: f32[1,128], index: 4, kind: input, shape index: {}]
  %s5 = inlined_call_operand.hbm [shape: f32[16,128], index: 5, kind: output, shape index: {}]
  %s6 = sld [smem:[#allocation0]]
  $region50: #{mlp_forward.1} parent=0
    _
  %s8 = ssub.s32 1, %s6
  %s9 = scalar_select 0, %s8, %s6
  $region1: #{mlp_forward.1} parent=0
    #allocation2 [shape = 'u8[8192]{0}', space=vmem, size = 0x2000, scoped, tag = 'input window, operand 0, single buffered']
    #allocation3 [shape = 's32[1]{0}', space=sflag, size = 0x4, scoped, tag = 'scoped memory for mlp_forward.1']
    #allocation4 [shape = 's32[1]{0}', space=sflag, size = 0x4, scoped, tag = 'scoped memory for mlp_forward.1']
    #allocation5 [shape = 'u8[131072]{0}', space=vmem, size = 0x20000, scoped, tag = 'input window, operand 1, single buffered']
    #allocation6 [shape = 's32[1]{0}', space=sflag, size = 0x4, scoped, tag = 'scoped memory for mlp_forward.1']
    #allocation7 [shape = 'u8[1024]{0}', space=vmem, size = 0x400, scoped, tag = 'input window, operand 2, single buffered']
    #allocation8 [shape = 'u8[131072]{0}', space=vmem, size = 0x20000, scoped, tag = 'input window, operand 3, single buffered']
    #allocation9 [shape = 's32[1]{0}', space=sflag, size = 0x4, scoped, tag = 'scoped memory for mlp_forward.1']
    #allocation10 [shape = 'u8[512]{0}', space=vmem, size = 0x400, scoped, tag = 'input window, operand 4, single buffered']
    #allocation11 [shape = 'u8[8192]{0}', space=vmem, size = 0x2000, scoped, tag = 'output window, operand 0, single buffered']
    %10 = vsyncpa [#allocation3], 0
    %11 = vsyncpa [#allocation6], 0
    %12 = vsyncpa [#allocation9], 0
    %13 = vsyncpa [#allocation4], 0
    // Predicated region
    $region2: #{mlp_forward.1} parent=1 // pred_check
      _
    $region3: #{mlp_forward.1} parent=1 // pred_check_branch
      %15 = sbr.rel (0) target = $region5
    $region4: #{mlp_forward.1} parent=1 // pred_region
      %s17 = ssub.s32 256, 256
      %18 = vsyncadd [#allocation3], %s17
      %s19 = sshll.u32 [#allocation2], 4
      %s20 = int_to_ptr.vmem [resolvable:$true] %s19
      %25 = dma.hbm_to_vmem [thread:$0]  %s0, 256, %s20, [#allocation3], 128, 128, 8
    $region5: #{mlp_forward.1} parent=1 // pred_fallthru
      _
    // Predicated region
    $region6: #{mlp_forward.1} parent=1 // pred_check
      _
    $region7: #{mlp_forward.1} parent=1 // pred_check_branch
      %27 = sbr.rel (0) target = $region9
    $region8: #{mlp_forward.1} parent=1 // pred_region
      %s29 = ssub.s32 4096, 4096
      %30 = vsyncadd [#allocation6], %s29
      %s31 = sshll.u32 [#allocation5], 4
      %s32 = int_to_ptr.vmem [resolvable:$true] %s31
      %37 = dma.hbm_to_vmem [thread:$0]  %s1, 4096, %s32, [#allocation6], 128, 128, 8
    $region9: #{mlp_forward.1} parent=1 // pred_fallthru
      _
    // Predicated region
    $region10: #{mlp_forward.1} parent=1 // pred_check
      _
    $region11: #{mlp_forward.1} parent=1 // pred_check_branch
      %39 = sbr.rel (0) target = $region13
    $region12: #{mlp_forward.1} parent=1 // pred_region
      %s41 = ssub.s32 32, 32
      %42 = vsyncadd [#allocation6], %s41
      %s44 = sshll.u32 [#allocation7], 4
      %s45 = int_to_ptr.vmem [resolvable:$true] %s44
      %47 = dma.hbm_to_vmem [thread:$0]  %s2, 32, %s45, [#allocation6]
    $region13: #{mlp_forward.1} parent=1 // pred_fallthru
      _
    // Predicated region
    $region14: #{mlp_forward.1} parent=1 // pred_check
      _
    $region15: #{mlp_forward.1} parent=1 // pred_check_branch
      %49 = sbr.rel (0) target = $region17
    $region16: #{mlp_forward.1} parent=1 // pred_region
      %s51 = ssub.s32 4096, 4096
      %52 = vsyncadd [#allocation9], %s51
      %s53 = sshll.u32 [#allocation8], 4
      %s54 = int_to_ptr.vmem [resolvable:$true] %s53
      %59 = dma.hbm_to_vmem [thread:$0]  %s3, 4096, %s54, [#allocation9], 256, 256, 16
    $region17: #{mlp_forward.1} parent=1 // pred_fallthru
      _
    // Predicated region
    $region18: #{mlp_forward.1} parent=1 // pred_check
      _
    $region19: #{mlp_forward.1} parent=1 // pred_check_branch
      %61 = sbr.rel (0) target = $region21
    $region20: #{mlp_forward.1} parent=1 // pred_region
      %s63 = ssub.s32 16, 16
      %64 = vsyncadd [#allocation9], %s63
      %s66 = sshll.u32 [#allocation10], 4
      %s67 = int_to_ptr.vmem [resolvable:$true] %s66
      %69 = dma.hbm_to_vmem [thread:$0]  %s4, 16, %s67, [#allocation9]
    $region21: #{mlp_forward.1} parent=1 // pred_fallthru
      _
    // Predicated region
    $region22: #{mlp_forward.1} parent=1 // pred_check
      _
    $region23: #{mlp_forward.1} parent=1 // pred_check_branch
      %71 = sbr.rel (0) target = $region25
    $region24: #{mlp_forward.1} parent=1 // pred_region
      %72 = dma.done [#allocation3], 256
    $region25: #{mlp_forward.1} parent=1 // pred_fallthru
      _
    // Predicated region
    $region26: #{mlp_forward.1} parent=1 // pred_check
      _
    $region27: #{mlp_forward.1} parent=1 // pred_check_branch
      %74 = sbr.rel (0) target = $region29
    $region28: #{mlp_forward.1} parent=1 // pred_region
      %75 = dma.done [#allocation6], 4096
    $region29: #{mlp_forward.1} parent=1 // pred_fallthru
      _
    // Predicated region
    $region30: #{mlp_forward.1} parent=1 // pred_check
      _
    $region31: #{mlp_forward.1} parent=1 // pred_check_branch
      %77 = sbr.rel (0) target = $region33
    $region32: #{mlp_forward.1} parent=1 // pred_region
      %78 = dma.done [#allocation6], 32
    $region33: #{mlp_forward.1} parent=1 // pred_fallthru
      _
    // Predicated region
    $region34: #{mlp_forward.1} parent=1 // pred_check
      _
    $region35: #{mlp_forward.1} parent=1 // pred_check_branch
      %80 = sbr.rel (0) target = $region37
    $region36: #{mlp_forward.1} parent=1 // pred_region
      %81 = dma.done [#allocation9], 4096
    $region37: #{mlp_forward.1} parent=1 // pred_fallthru
      _
    // Predicated region
    $region38: #{mlp_forward.1} parent=1 // pred_check
      _
    $region39: #{mlp_forward.1} parent=1 // pred_check_branch
      %83 = sbr.rel (0) target = $region41
    $region40: #{mlp_forward.1} parent=1 // pred_region
      %84 = dma.done [#allocation9], 16
    $region41: #{mlp_forward.1} parent=1 // pred_fallthru
      _
    %v85 = vld [vmem:[#allocation2] sm:$0xff]
    %v86 = vld [vmem:[#allocation2 + $0x8] sm:$0xff]
    %v87 = vld [vmem:[#allocation5] sm:$0xff]
    %v88 = vld [vmem:[#allocation5 + $0x8] sm:$0xff]
    %v89 = vld [vmem:[#allocation5 + $0x10] sm:$0xff]
    %v90 = vld [vmem:[#allocation5 + $0x18] sm:$0xff]
    %v91 = vld [vmem:[#allocation5 + $0x20] sm:$0xff]
    %v92 = vld [vmem:[#allocation5 + $0x28] sm:$0xff]
    %v93 = vld [vmem:[#allocation5 + $0x30] sm:$0xff]
    %v94 = vld [vmem:[#allocation5 + $0x38] sm:$0xff]
    %v95 = vld [vmem:[#allocation5 + $0x40] sm:$0xff]
    %v96 = vld [vmem:[#allocation5 + $0x48] sm:$0xff]
    %v97 = vld [vmem:[#allocation5 + $0x50] sm:$0xff]
    %v98 = vld [vmem:[#allocation5 + $0x58] sm:$0xff]
    %v99 = vld [vmem:[#allocation5 + $0x60] sm:$0xff]
    %v100 = vld [vmem:[#allocation5 + $0x68] sm:$0xff]
    %v101 = vld [vmem:[#allocation5 + $0x70] sm:$0xff]
    %v102 = vld [vmem:[#allocation5 + $0x78] sm:$0xff]
    %v103 = vld [vmem:[#allocation5 + $0x80] sm:$0xff]
    %v104 = vld [vmem:[#allocation5 + $0x88] sm:$0xff]
    %v105 = vld [vmem:[#allocation5 + $0x90] sm:$0xff]
    %v106 = vld [vmem:[#allocation5 + $0x98] sm:$0xff]
    %v107 = vld [vmem:[#allocation5 + $0xa0] sm:$0xff]
    %v108 = vld [vmem:[#allocation5 + $0xa8] sm:$0xff]
    %v109 = vld [vmem:[#allocation5 + $0xb0] sm:$0xff]
    %v110 = vld [vmem:[#allocation5 + $0xb8] sm:$0xff]
    %v111 = vld [vmem:[#allocation5 + $0xc0] sm:$0xff]
    %v112 = vld [vmem:[#allocation5 + $0xc8] sm:$0xff]
    %v113 = vld [vmem:[#allocation5 + $0xd0] sm:$0xff]
    %v114 = vld [vmem:[#allocation5 + $0xd8] sm:$0xff]
    %v115 = vld [vmem:[#allocation5 + $0xe0] sm:$0xff]
    %v116 = vld [vmem:[#allocation5 + $0xe8] sm:$0xff]
    %v117 = vld [vmem:[#allocation5 + $0xf0] sm:$0xff]
    %v118 = vld [vmem:[#allocation5 + $0xf8] sm:$0xff]
    %v119 = vld [vmem:[#allocation7] sm:$0x3]
    %v121 = vlaneseq
    %v122 = vshrl.u32 %v121, 7
    %v123 = vsub.s32 0, %v122
    %v124 = vrot.slane %v119, %v123
    %v125 = vlaneseq
    %v126 = vshrl.u32 %v125, 7
    %v127 = vsub.s32 1, %v126
    %v128 = vrot.slane %v119, %v127
    %131 = vmatprep.subr.mxu0 0.0
    %132 = vmatpush1.xpose.msra.mxu0 %v87
    %133 = vmatprep.subr.mxu0 0.0
    %134 = vmatpush1.xpose.msra.mxu0 %v88
    %135 = vmatprep.subr.mxu0 0.0
    %136 = vmatpush1.xpose.msra.mxu0 %v89
    %137 = vmatprep.subr.mxu0 0.0
    %138 = vmatpush1.xpose.msra.mxu0 %v90
    %139 = vmatprep.subr.mxu0 0.0
    %140 = vmatpush1.xpose.msra.mxu0 %v91
    %141 = vmatprep.subr.mxu0 0.0
    %142 = vmatpush1.xpose.msra.mxu0 %v92
    %143 = vmatprep.subr.mxu0 0.0
    %144 = vmatpush1.xpose.msra.mxu0 %v93
    %145 = vmatprep.subr.mxu0 0.0
    %146 = vmatpush1.xpose.msra.mxu0 %v94
    %147 = vmatprep.subr.mxu0 0.0
    %148 = vmatpush1.xpose.msra.mxu0 %v95
    %149 = vmatprep.subr.mxu0 0.0
    %150 = vmatpush1.xpose.msra.mxu0 %v96
    %151 = vmatprep.subr.mxu0 0.0
    %152 = vmatpush1.xpose.msra.mxu0 %v97
    %153 = vmatprep.subr.mxu0 0.0
    %154 = vmatpush1.xpose.msra.mxu0 %v98
    %155 = vmatprep.subr.mxu0 0.0
    %156 = vmatpush1.xpose.msra.mxu0 %v99
    %157 = vmatprep.subr.mxu0 0.0
    %158 = vmatpush1.xpose.msra.mxu0 %v100
    %159 = vmatprep.subr.mxu0 0.0
    %160 = vmatpush1.xpose.msra.mxu0 %v101
    %161 = vmatprep.subr.mxu0 0.0
    %162 = vmatpush1.xpose.msra.mxu0 %v102
    %163 = vmatprep.subr.mxu0 0.0
    %164 = vmatpush1.xpose.msra.mxu0 %v103
    %165 = vmatprep.subr.mxu0 0.0
    %166 = vmatpush1.xpose.msra.mxu0 %v104
    %167 = vmatprep.subr.mxu0 0.0
    %168 = vmatpush1.xpose.msra.mxu0 %v105
    %169 = vmatprep.subr.mxu0 0.0
    %170 = vmatpush1.xpose.msra.mxu0 %v106
    %171 = vmatprep.subr.mxu0 0.0
    %172 = vmatpush1.xpose.msra.mxu0 %v107
    %173 = vmatprep.subr.mxu0 0.0
    %174 = vmatpush1.xpose.msra.mxu0 %v108
    %175 = vmatprep.subr.mxu0 0.0
    %176 = vmatpush1.xpose.msra.mxu0 %v109
    %177 = vmatprep.subr.mxu0 0.0
    %178 = vmatpush1.xpose.msra.mxu0 %v110
    %179 = vmatprep.subr.mxu0 0.0
    %180 = vmatpush1.xpose.msra.mxu0 %v111
    %181 = vmatprep.subr.mxu0 0.0
    %182 = vmatpush1.xpose.msra.mxu0 %v112
    %183 = vmatprep.subr.mxu0 0.0
    %184 = vmatpush1.xpose.msra.mxu0 %v113
    %185 = vmatprep.subr.mxu0 0.0
    %186 = vmatpush1.xpose.msra.mxu0 %v114
    %187 = vmatprep.subr.mxu0 0.0
    %188 = vmatpush1.xpose.msra.mxu0 %v115
    %189 = vmatprep.subr.mxu0 0.0
    %190 = vmatpush1.xpose.msra.mxu0 %v116
    %191 = vmatprep.subr.mxu0 0.0
    %192 = vmatpush1.xpose.msra.mxu0 %v117
    %193 = vmatprep.subr.mxu0 0.0
    %194 = vmatpush1.xpose.msra.mxu0 %v118
    %195 = vmatprep.mubr.f32.mxu0 0.0
    %196 = vmatmul.mubr.f32.gmra.mrb[0].mxu0 %v85
    %v197 = vpop.f32.mrb[0].mxu0
    %v198 = vadd.f32 %v124, %v197
    %v199 = vpop.f32.mrb[0].mxu0
    %v200 = vadd.f32 %v128, %v199
    %201 = vmatprep.mubr.f32.mxu0 0.0
    %202 = vmatmul.mubr.f32.gmra.mrb[0].mxu0 %v86
    %v203 = vpop.f32.mrb[0].mxu0
    %v204 = vadd.f32 %v124, %v203
    %v205 = vpop.f32.mrb[0].mxu0
    %v206 = vadd.f32 %v128, %v205
    %207 = vdwg.mxu0
    %v208 = vmul.f32 %v198, 0.5
    %v209 = vmul.f32 %v200, 0.5
    %v210 = vmul.f32 %v204, 0.5
    %v211 = vmul.f32 %v206, 0.5
    %v212 = vmul.f32 %v198, 0.70710677
    %v213 = vmul.f32 %v200, 0.70710677
    %v214 = vmul.f32 %v204, 0.70710677
    %v215 = vmul.f32 %v206, 0.70710677
    %vm216 = vcmp.ge.f32.partialorder %v212, 0.0
    %vm217 = vcmp.ge.f32.partialorder %v213, 0.0
    %vm218 = vcmp.ge.f32.partialorder %v214, 0.0
    %vm219 = vcmp.ge.f32.partialorder %v215, 0.0
    %v220 = vsel %vm216, 1.0, -1.0
    %v221 = vsel %vm217, 1.0, -1.0
    %v222 = vsel %vm218, 1.0, -1.0
    %v223 = vsel %vm219, 1.0, -1.0
    %v224 = vand.u32 2147483647, %v212
    %v225 = vand.u32 2147483647, %v213
    %v226 = vand.u32 2147483647, %v214
    %v227 = vand.u32 2147483647, %v215
    %v228 = vmul.f32 %v224, 0.3275911
    %v229 = vmul.f32 %v225, 0.3275911
    %v230 = vmul.f32 %v226, 0.3275911
    %v231 = vmul.f32 %v227, 0.3275911
    %v232 = vadd.f32 %v228, 1.0
    %v233 = vadd.f32 %v229, 1.0
    %v234 = vadd.f32 %v230, 1.0
    %v235 = vadd.f32 %v231, 1.0
    %v236 = vrcp.pop %v232
    %v237 = vrcp.pop %v233
    %v238 = vrcp.pop %v234
    %v239 = vrcp.pop %v235
    %v240 = vmul.f32 %v236, 1.0614054
    %v241 = vmul.f32 %v237, 1.0614054
    %v242 = vmul.f32 %v238, 1.0614054
    %v243 = vmul.f32 %v239, 1.0614054
    %v244 = vadd.f32 %v240, -1.4531521
    %v245 = vadd.f32 %v241, -1.4531521
    %v246 = vadd.f32 %v242, -1.4531521
    %v247 = vadd.f32 %v243, -1.4531521
    %v248 = vmul.f32 %v244, %v236
    %v249 = vmul.f32 %v245, %v237
    %v250 = vmul.f32 %v246, %v238
    %v251 = vmul.f32 %v247, %v239
    %v252 = vadd.f32 %v248, 1.4214138
    %v253 = vadd.f32 %v249, 1.4214138
    %v254 = vadd.f32 %v250, 1.4214138
    %v255 = vadd.f32 %v251, 1.4214138
    %v256 = vmul.f32 %v252, %v236
    %v257 = vmul.f32 %v253, %v237
    %v258 = vmul.f32 %v254, %v238
    %v259 = vmul.f32 %v255, %v239
    %v260 = vadd.f32 %v256, -0.28449672
    %v261 = vadd.f32 %v257, -0.28449672
    %v262 = vadd.f32 %v258, -0.28449672
    %v263 = vadd.f32 %v259, -0.28449672
    %v264 = vmul.f32 %v260, %v236
    %v265 = vmul.f32 %v261, %v237
    %v266 = vmul.f32 %v262, %v238
    %v267 = vmul.f32 %v263, %v239
    %v268 = vadd.f32 %v264, 0.2548296
    %v269 = vadd.f32 %v265, 0.2548296
    %v270 = vadd.f32 %v266, 0.2548296
    %v271 = vadd.f32 %v267, 0.2548296
    %v272 = vmul.f32 %v268, %v236
    %v273 = vmul.f32 %v269, %v237
    %v274 = vmul.f32 %v270, %v238
    %v275 = vmul.f32 %v271, %v239
    %v276 = vsub.f32 0.0, %v224
    %v277 = vsub.f32 0.0, %v225
    %v278 = vsub.f32 0.0, %v226
    %v279 = vsub.f32 0.0, %v227
    %v280 = vmul.f32 %v276, %v224
    %v281 = vmul.f32 %v277, %v225
    %v282 = vmul.f32 %v278, %v226
    %v283 = vmul.f32 %v279, %v227
    %v284 = vmul.f32 %v280, 1.442695
    %v285 = vpow.pop %v284
    %v286 = vmul.f32 %v281, 1.442695
    %v287 = vpow.pop %v286
    %v288 = vmul.f32 %v282, 1.442695
    %v289 = vpow.pop %v288
    %v290 = vmul.f32 %v283, 1.442695
    %v291 = vpow.pop %v290
    %v292 = vmul.f32 %v272, %v285
    %v293 = vmul.f32 %v273, %v287
    %v294 = vmul.f32 %v274, %v289
    %v295 = vmul.f32 %v275, %v291
    %v296 = vsub.f32 1.0, %v292
    %v297 = vsub.f32 1.0, %v293
    %v298 = vsub.f32 1.0, %v294
    %v299 = vsub.f32 1.0, %v295
    %v300 = vmul.f32 %v220, %v296
    %v301 = vmul.f32 %v221, %v297
    %v302 = vmul.f32 %v222, %v298
    %v303 = vmul.f32 %v223, %v299
    %v304 = vadd.f32 %v300, 1.0
    %v305 = vadd.f32 %v301, 1.0
    %v306 = vadd.f32 %v302, 1.0
    %v307 = vadd.f32 %v303, 1.0
    %v308 = vmul.f32 %v208, %v304
    %v309 = vmul.f32 %v209, %v305
    %v310 = vmul.f32 %v210, %v306
    %v311 = vmul.f32 %v211, %v307
    %v312 = vld [vmem:[#allocation8] sm:$0xff]
    %v313 = vld [vmem:[#allocation8 + $0x8] sm:$0xff]
    %v314 = vld [vmem:[#allocation8 + $0x10] sm:$0xff]
    %v315 = vld [vmem:[#allocation8 + $0x18] sm:$0xff]
    %v316 = vld [vmem:[#allocation8 + $0x20] sm:$0xff]
    %v317 = vld [vmem:[#allocation8 + $0x28] sm:$0xff]
    %v318 = vld [vmem:[#allocation8 + $0x30] sm:$0xff]
    %v319 = vld [vmem:[#allocation8 + $0x38] sm:$0xff]
    %v320 = vld [vmem:[#allocation8 + $0x40] sm:$0xff]
    %v321 = vld [vmem:[#allocation8 + $0x48] sm:$0xff]
    %v322 = vld [vmem:[#allocation8 + $0x50] sm:$0xff]
    %v323 = vld [vmem:[#allocation8 + $0x58] sm:$0xff]
    %v324 = vld [vmem:[#allocation8 + $0x60] sm:$0xff]
    %v325 = vld [vmem:[#allocation8 + $0x68] sm:$0xff]
    %v326 = vld [vmem:[#allocation8 + $0x70] sm:$0xff]
    %v327 = vld [vmem:[#allocation8 + $0x78] sm:$0xff]
    %v328 = vld [vmem:[#allocation8 + $0x80] sm:$0xff]
    %v329 = vld [vmem:[#allocation8 + $0x88] sm:$0xff]
    %v330 = vld [vmem:[#allocation8 + $0x90] sm:$0xff]
    %v331 = vld [vmem:[#allocation8 + $0x98] sm:$0xff]
    %v332 = vld [vmem:[#allocation8 + $0xa0] sm:$0xff]
    %v333 = vld [vmem:[#allocation8 + $0xa8] sm:$0xff]
    %v334 = vld [vmem:[#allocation8 + $0xb0] sm:$0xff]
    %v335 = vld [vmem:[#allocation8 + $0xb8] sm:$0xff]
    %v336 = vld [vmem:[#allocation8 + $0xc0] sm:$0xff]
    %v337 = vld [vmem:[#allocation8 + $0xc8] sm:$0xff]
    %v338 = vld [vmem:[#allocation8 + $0xd0] sm:$0xff]
    %v339 = vld [vmem:[#allocation8 + $0xd8] sm:$0xff]
    %v340 = vld [vmem:[#allocation8 + $0xe0] sm:$0xff]
    %v341 = vld [vmem:[#allocation8 + $0xe8] sm:$0xff]
    %v342 = vld [vmem:[#allocation8 + $0xf0] sm:$0xff]
    %v343 = vld [vmem:[#allocation8 + $0xf8] sm:$0xff]
    %v344 = vld [vmem:[#allocation10] sm:$0x1]
    %v346 = vlaneseq
    %v347 = vshrl.u32 %v346, 7
    %v348 = vsub.s32 0, %v347
    %v349 = vrot.slane %v344, %v348
    %351 = vmatprep.subr.mxu0 %v313
    %352 = vmatpush1.xpose.msra.mxu0 %v312
    %353 = vmatprep.subr.mxu0 %v315
    %354 = vmatpush1.xpose.msra.mxu0 %v314
    %355 = vmatprep.subr.mxu0 %v317
    %356 = vmatpush1.xpose.msra.mxu0 %v316
    %357 = vmatprep.subr.mxu0 %v319
    %358 = vmatpush1.xpose.msra.mxu0 %v318
    %359 = vmatprep.subr.mxu0 %v321
    %360 = vmatpush1.xpose.msra.mxu0 %v320
    %361 = vmatprep.subr.mxu0 %v323
    %362 = vmatpush1.xpose.msra.mxu0 %v322
    %363 = vmatprep.subr.mxu0 %v325
    %364 = vmatpush1.xpose.msra.mxu0 %v324
    %365 = vmatprep.subr.mxu0 %v327
    %366 = vmatpush1.xpose.msra.mxu0 %v326
    %367 = vmatprep.subr.mxu0 %v329
    %368 = vmatpush1.xpose.msra.mxu0 %v328
    %369 = vmatprep.subr.mxu0 %v331
    %370 = vmatpush1.xpose.msra.mxu0 %v330
    %371 = vmatprep.subr.mxu0 %v333
    %372 = vmatpush1.xpose.msra.mxu0 %v332
    %373 = vmatprep.subr.mxu0 %v335
    %374 = vmatpush1.xpose.msra.mxu0 %v334
    %375 = vmatprep.subr.mxu0 %v337
    %376 = vmatpush1.xpose.msra.mxu0 %v336
    %377 = vmatprep.subr.mxu0 %v339
    %378 = vmatpush1.xpose.msra.mxu0 %v338
    %379 = vmatprep.subr.mxu0 %v341
    %380 = vmatpush1.xpose.msra.mxu0 %v340
    %381 = vmatprep.subr.mxu0 %v343
    %382 = vmatpush1.xpose.msra.mxu0 %v342
    %383 = vmatprep.subr.mxu0 0.0
    %384 = vmatpush1.xpose.msra.mxu0 0.0
    %385 = vmatprep.subr.mxu0 0.0
    %386 = vmatpush1.xpose.msra.mxu0 0.0
    %387 = vmatprep.subr.mxu0 0.0
    %388 = vmatpush1.xpose.msra.mxu0 0.0
    %389 = vmatprep.subr.mxu0 0.0
    %390 = vmatpush1.xpose.msra.mxu0 0.0
    %391 = vmatprep.subr.mxu0 0.0
    %392 = vmatpush1.xpose.msra.mxu0 0.0
    %393 = vmatprep.subr.mxu0 0.0
    %394 = vmatpush1.xpose.msra.mxu0 0.0
    %395 = vmatprep.subr.mxu0 0.0
    %396 = vmatpush1.xpose.msra.mxu0 0.0
    %397 = vmatprep.subr.mxu0 0.0
    %398 = vmatpush1.xpose.msra.mxu0 0.0
    %399 = vmatprep.subr.mxu0 0.0
    %400 = vmatpush1.xpose.msra.mxu0 0.0
    %401 = vmatprep.subr.mxu0 0.0
    %402 = vmatpush1.xpose.msra.mxu0 0.0
    %403 = vmatprep.subr.mxu0 0.0
    %404 = vmatpush1.xpose.msra.mxu0 0.0
    %405 = vmatprep.subr.mxu0 0.0
    %406 = vmatpush1.xpose.msra.mxu0 0.0
    %407 = vmatprep.subr.mxu0 0.0
    %408 = vmatpush1.xpose.msra.mxu0 0.0
    %409 = vmatprep.subr.mxu0 0.0
    %410 = vmatpush1.xpose.msra.mxu0 0.0
    %411 = vmatprep.subr.mxu0 0.0
    %412 = vmatpush1.xpose.msra.mxu0 0.0
    %413 = vmatprep.subr.mxu0 0.0
    %414 = vmatpush1.xpose.msra.mxu0 0.0
    %415 = vmatprep.mubr.f32.mxu0 %v309
    %416 = vmatmul.mubr.f32.gmra.mrb[0].mxu0 %v308
    %v417 = vpop.f32.mrb[0].mxu0
    %v418 = vadd.f32 %v349, %v417
    %v419 = vpop.f32.mrb[0].mxu0
    %420 = vmatprep.mubr.f32.mxu0 %v311
    %421 = vmatmul.mubr.f32.gmra.mrb[0].mxu0 %v310
    %v422 = vpop.f32.mrb[0].mxu0
    %v423 = vadd.f32 %v349, %v422
    %v424 = vpop.f32.mrb[0].mxu0
    %425 = vdwg.mxu0
    %426 = vst [vmem:[#allocation11] sm:$0xff] %v418
    %427 = vst [vmem:[#allocation11 + $0x8] sm:$0xff] %v423
    // Predicated region
    $region42: #{mlp_forward.1} parent=1 // pred_check
      _
    $region43: #{mlp_forward.1} parent=1 // pred_check_branch
      %429 = sbr.rel (0) target = $region45
    $region44: #{mlp_forward.1} parent=1 // pred_region
      %s431 = ssub.s32 256, 256
      %432 = vsyncadd [#allocation4], %s431
      %s433 = sshll.u32 [#allocation11], 4
      %s434 = int_to_ptr.vmem [resolvable:$true] %s433
      %439 = dma.vmem_to_hbm [thread:$0]  %s434, 256, %s5, [#allocation4], 128, 128, 8
    $region45: #{mlp_forward.1} parent=1 // pred_fallthru
      _
    // Predicated region
    $region46: #{mlp_forward.1} parent=1 // pred_check
      _
    $region47: #{mlp_forward.1} parent=1 // pred_check_branch
      %441 = sbr.rel (0) target = $region49
    $region48: #{mlp_forward.1} parent=1 // pred_region
      %442 = dma.done [#allocation4], 256
    $region49: #{mlp_forward.1} parent=1 // pred_fallthru
      _
    %443 = vsyncpa [#allocation3], 1
    %444 = vsyncpa [#allocation6], 1
    %445 = vsyncpa [#allocation9], 1
    %446 = vsyncpa [#allocation4], 1

</llo_original>
